<compile_context>
chip_gen: v7x
topology: tpu7x:2x2x1
jax: 0.10.0
libtpu: 0.0.40
codegen_flags: <defaults>
</compile_context>

<pallas_src>
import functools

import jax
import jax.numpy as jnp
from jax import lax
from jax.experimental import pallas as pl
from jax.experimental.pallas import tpu as pltpu


# ----------------------------------------------------------------------------
# Fused Pallas kernel
# ----------------------------------------------------------------------------
def _basic_block_kernel(x_ref, w1_ref, b1_ref, w2_ref, b2_ref, o_ref, scr_ref,
                        *, H, W):
    """Fused BasicBlock forward for one batch element.

    x_ref:   (1, C, H*W)   input, channels on sublanes, flattened H*W on lanes
    w1_ref:  (C, 9*C)      conv1 weights (tap-major along K), BN1 scale folded
    b1_ref:  (C, 1)        BN1 folded bias
    w2_ref:  (C, 9*C)      conv2 weights, BN2 scale folded
    b2_ref:  (C, 1)        BN2 folded bias
    o_ref:   (1, C, H*W)   output (lane-dense: last dim = H*W = multiple of 128)
    scr_ref: (9*C, H*W + 2*(W+1))  im2col staging scratch (VMEM)
    """
    HW = H * W
    C = x_ref.shape[1]
    margin = W + 1  # widest tap shift along the flat H*W axis is W+1

    # w-coordinate (column within a row) of every lane position.  Built once;
    # the two horizontal-boundary keep-masks are shared by both convolutions.
    col = lax.broadcasted_iota(jnp.int32, (1, HW), 1) % W
    keep_for_dw_m1 = col < (W - 1)   # valid source lanes for taps with dw = -1
    keep_for_dw_p1 = col >= 1        # valid source lanes for taps with dw = +1

    # Zero the staging scratch once per grid step.  The lanes that the tap
    # stores below never cover are exactly the vertically out-of-bounds
    # positions of each tap and must read back as zero.  (Cannot be hoisted to
    # "first iteration only": with parallel grid semantics each TensorCore
    # owns its own scratch and its first program_id is not necessarily 0.)
    scr_ref[...] = jnp.zeros_like(scr_ref)

    def conv3x3_bn(t, w_ref_, b_ref_):
        """t: (C, H*W) f32 -> (C, H*W) f32 = BN_fold(conv3x3(t)) (pre-ReLU)."""
        # Masked variants of the activation, built once and reused by the
        # three taps of each horizontal offset (zero columns whose tap would
        # wrap across a row boundary).
        t_dw_m1 = jnp.where(keep_for_dw_m1, t, 0.0)
        t_dw_p1 = jnp.where(keep_for_dw_p1, t, 0.0)
        src_for_dw = {-1: t_dw_m1, 0: t, 1: t_dw_p1}

        # Build the (9C, H*W) im2col patch in scratch.  The tap with spatial
        # offset (dh, dw) needs t shifted by s = dh*W + dw along the flat H*W
        # axis, so store t into sublane band k at lane offset (margin - s) and
        # read every band back at lane offset margin.  Vertically OOB lanes
        # are never covered by the store and read back the zeroed border.
        for kh in range(3):
            for kw in range(3):
                dh, dw = kh - 1, kw - 1
                s = dh * W + dw
                k = kh * 3 + kw
                scr_ref[pl.ds(k * C, C), pl.ds(margin - s, HW)] = src_for_dw[dw]

        patch = scr_ref[:, pl.ds(margin, HW)]                   # (9C, H*W)
        acc = jnp.dot(w_ref_[...], patch,
                      preferred_element_type=jnp.float32)       # (C, H*W)
        return acc + b_ref_[...]

    x = x_ref[0].astype(jnp.float32)                            # (C, H*W)

    y = jnp.maximum(conv3x3_bn(x, w1_ref, b1_ref), 0.0)         # relu(bn1(conv1 x))
    z = conv3x3_bn(y, w2_ref, b2_ref) + x                       # bn2(conv2 y) + id
    o_ref[0] = jnp.maximum(z, 0.0).astype(o_ref.dtype)          # final relu


# ----------------------------------------------------------------------------
# Wrapper
# ----------------------------------------------------------------------------
def _fold_bn(gamma, beta, mean, var, eps=1e-5):
    scale = gamma / jnp.sqrt(var + eps)
    bias = beta - mean * scale
    return scale, bias


def _pack_conv_bn(w_oihw, gamma, beta, mean, var):
    """torch (Cout, Cin, 3, 3) conv weight + eval-mode BN ->
    (Cout, 9*Cin) matrix (K index = (kh*3+kw)*Cin + ci, BN scale folded)
    and (Cout, 1) folded bias."""
    cout, cin = w_oihw.shape[0], w_oihw.shape[1]
    scale, bias = _fold_bn(gamma, beta, mean, var)
    wmat = jnp.transpose(w_oihw, (0, 2, 3, 1)).reshape(cout, 9 * cin)
    wmat = wmat * scale[:, None]
    return wmat, bias.reshape(cout, 1)


@jax.jit
def basic_block_forward(x_nchw, params):
    """BasicBlock forward (stride=1, identity shortcut). Input/output NCHW."""
    N, C, H, W = x_nchw.shape
    HW = H * W

    w1m, b1m = _pack_conv_bn(params["conv1_w"], params["bn1_gamma"],
                             params["bn1_beta"], params["bn1_mean"],
                             params["bn1_var"])
    w2m, b2m = _pack_conv_bn(params["conv2_w"], params["bn2_gamma"],
                             params["bn2_beta"], params["bn2_mean"],
                             params["bn2_var"])

    x_flat = x_nchw.reshape(N, C, HW)   # free reshape; NCHW consumed directly

    out_flat = pl.pallas_call(
        functools.partial(_basic_block_kernel, H=H, W=W),
        out_shape=jax.ShapeDtypeStruct((N, C, HW), x_nchw.dtype),
        grid=(N,),
        in_specs=[
            pl.BlockSpec((1, C, HW), lambda n: (n, 0, 0)),
            pl.BlockSpec((C, 9 * C), lambda n: (0, 0)),
            pl.BlockSpec((C, 1), lambda n: (0, 0)),
            pl.BlockSpec((C, 9 * C), lambda n: (0, 0)),
            pl.BlockSpec((C, 1), lambda n: (0, 0)),
        ],
        out_specs=pl.BlockSpec((1, C, HW), lambda n: (n, 0, 0)),
        scratch_shapes=[pltpu.VMEM((9 * C, HW + 2 * (W + 1)), jnp.float32)],
        compiler_params=pltpu.CompilerParams(
            dimension_semantics=("parallel",)),
    )(x_flat, w1m, b1m, w2m, b2m)

    return out_flat.reshape(N, C, H, W)


# ----------------------------------------------------------------------------
# Pure-JAX reference (PyTorch NCHW semantics, eval-mode BN)
# ----------------------------------------------------------------------------
def _ref_conv(x_nchw, w, stride=1):
    return lax.conv_general_dilated(
        x_nchw, w, window_strides=(stride, stride), padding=((1, 1), (1, 1)),
        dimension_numbers=("NCHW", "OIHW", "NCHW"))


def _ref_bn(x_nchw, gamma, beta, mean, var, eps=1e-5):
    g = gamma.reshape(1, -1, 1, 1)
    b = beta.reshape(1, -1, 1, 1)
    m = mean.reshape(1, -1, 1, 1)
    v = var.reshape(1, -1, 1, 1)
    return (x_nchw - m) / jnp.sqrt(v + eps) * g + b


def basic_block_reference(x_nchw, p):
    out = jax.nn.relu(_ref_bn(_ref_conv(x_nchw, p["conv1_w"]),
                              p["bn1_gamma"], p["bn1_beta"],
                              p["bn1_mean"], p["bn1_var"]))
    out = _ref_bn(_ref_conv(out, p["conv2_w"]),
                  p["bn2_gamma"], p["bn2_beta"], p["bn2_mean"], p["bn2_var"])
    out = out + x_nchw  # identity shortcut (stride=1, in_planes==planes)
    return jax.nn.relu(out)


# ----------------------------------------------------------------------------
# Main
# ----------------------------------------------------------------------------
if __name__ == "__main__":
    N, C, H, W = 2, 4, 16, 16          # in_planes = planes = 4, stride = 1
    key = jax.random.PRNGKey(0)
    ks = jax.random.split(key, 9)

    params = {
        "conv1_w":  0.1 * jax.random.normal(ks[0], (C, C, 3, 3), jnp.float32),
        "conv2_w":  0.1 * jax.random.normal(ks[1], (C, C, 3, 3), jnp.float32),
        "bn1_gamma": 1.0 + 0.1 * jax.random.normal(ks[2], (C,), jnp.float32),
        "bn1_beta":  0.1 * jax.random.normal(ks[3], (C,), jnp.float32),
        "bn1_mean":  0.05 * jax.random.normal(ks[4], (C,), jnp.float32),
        "bn1_var":   1.0 + 0.1 * jax.random.uniform(ks[5], (C,), jnp.float32),
        "bn2_gamma": 1.0 + 0.1 * jax.random.normal(ks[6], (C,), jnp.float32),
        "bn2_beta":  0.1 * jax.random.normal(ks[7], (C,), jnp.float32),
        "bn2_mean":  jnp.zeros((C,), jnp.float32),
        "bn2_var":   jnp.ones((C,), jnp.float32),
    }

    x = jax.random.normal(ks[8], (N, C, H, W), jnp.float32)

    out = basic_block_forward(x, params)
    out = jax.block_until_ready(out)

    ref = basic_block_reference(x, params)
    assert out.shape == (N, C, H, W), out.shape
    assert jnp.allclose(out, ref, atol=1e-4, rtol=1e-4), (
        float(jnp.max(jnp.abs(out - ref))))

    print("KERNEL_OK")
</pallas_src>

<mosaic_0001>
module attributes {stable_mosaic.version = 11 : i64} {
  func.func @_basic_block_kernel(%arg0: i32, %arg1: memref<1x4x256xf32, #tpu.memory_space<vmem>>, %arg2: memref<4x36xf32, #tpu.memory_space<vmem>>, %arg3: memref<4x1xf32, #tpu.memory_space<vmem>>, %arg4: memref<4x36xf32, #tpu.memory_space<vmem>>, %arg5: memref<4x1xf32, #tpu.memory_space<vmem>>, %arg6: memref<1x4x256xf32, #tpu.memory_space<vmem>>, %arg7: memref<36x290xf32, #tpu.memory_space<vmem>>) attributes {dimension_semantics = [#tpu.dimension_semantics<parallel>], iteration_bounds = array<i64: 2>, scalar_prefetch = 0 : i64, scratch_operands = 1 : i64, tpu.core_type = #tpu.core_type<tc>, window_params = [{transform_indices = @transform_0, window_bounds = array<i64: 1, 4, 256>}, {pipeline_mode = #tpu.pipeline_mode<synchronous>, transform_indices = @transform_1, window_bounds = array<i64: 4, 36>}, {pipeline_mode = #tpu.pipeline_mode<synchronous>, transform_indices = @transform_2, window_bounds = array<i64: 4, 1>}, {pipeline_mode = #tpu.pipeline_mode<synchronous>, transform_indices = @transform_3, window_bounds = array<i64: 4, 36>}, {pipeline_mode = #tpu.pipeline_mode<synchronous>, transform_indices = @transform_4, window_bounds = array<i64: 4, 1>}, {transform_indices = @transform_5, window_bounds = array<i64: 1, 4, 256>}]} {
    %0 = tpu.iota {dimensions = array<i32: 1>} : vector<1x256xi32>
    %c16_i32 = arith.constant 16 : i32
    %c0_i32 = arith.constant 0 : i32
    %1 = arith.cmpi eq, %c16_i32, %c0_i32 : i32
    %c1_i32 = arith.constant 1 : i32
    %2 = arith.select %1, %c1_i32, %c16_i32 : i32
    %3 = vector.broadcast %2 : i32 to vector<1x256xi32>
    %4 = arith.remsi %0, %3 : vector<1x256xi32>
    %c0_i32_0 = arith.constant 0 : i32
    %5 = vector.broadcast %c0_i32_0 : i32 to vector<1x256xi32>
    %6 = arith.cmpi ne, %4, %5 : vector<1x256xi32>
    %c0_i32_1 = arith.constant 0 : i32
    %7 = vector.broadcast %c0_i32_1 : i32 to vector<1x256xi32>
    %8 = arith.cmpi slt, %4, %7 : vector<1x256xi32>
    %c0_i32_2 = arith.constant 0 : i32
    %9 = arith.cmpi slt, %2, %c0_i32_2 : i32
    %10 = vector.broadcast %9 : i1 to vector<1x256xi1>
    %11 = vector.broadcast %10 : vector<1x256xi1> to vector<1x256xi1>
    %12 = arith.xori %8, %11 : vector<1x256xi1>
    %13 = arith.andi %12, %6 : vector<1x256xi1>
    %14 = vector.broadcast %2 : i32 to vector<1x256xi32>
    %15 = arith.addi %4, %14 : vector<1x256xi32>
    %16 = arith.select %13, %15, %4 : vector<1x256xi1>, vector<1x256xi32>
    %c15_i32 = arith.constant 15 : i32
    %17 = vector.broadcast %c15_i32 : i32 to vector<1x256xi32>
    %18 = arith.cmpi slt, %16, %17 : vector<1x256xi32>
    %c1_i32_3 = arith.constant 1 : i32
    %19 = vector.broadcast %c1_i32_3 : i32 to vector<1x256xi32>
    %20 = arith.cmpi sge, %16, %19 : vector<1x256xi32>
    %cst = arith.constant 0.000000e+00 : f32
    %21 = vector.broadcast %cst : f32 to vector<36x290xf32>
    %c0 = arith.constant 0 : index
    %c0_4 = arith.constant 0 : index
    %22 = vector.load %arg7[%c0, %c0_4] : memref<36x290xf32, #tpu.memory_space<vmem>>, vector<36x290xf32>
    tpu.vector_store %arg7[%c0, %c0_4], %21 {strides = array<i32>} : memref<36x290xf32, #tpu.memory_space<vmem>>, vector<36x290xf32>,
    %c0_5 = arith.constant 0 : index
    %c0_6 = arith.constant 0 : index
    %c0_7 = arith.constant 0 : index
    %23 = vector.load %arg1[%c0_5, %c0_6, %c0_7] : memref<1x4x256xf32, #tpu.memory_space<vmem>>, vector<1x4x256xf32>
    %24 = vector.shape_cast %23 : vector<1x4x256xf32> to vector<4x256xf32>
    %cst_8 = arith.constant 0.000000e+00 : f32
    %25 = vector.shape_cast %18 : vector<1x256xi1> to vector<1x256xi1>
    %26 = vector.broadcast %25 : vector<1x256xi1> to vector<4x256xi1>
    %27 = vector.broadcast %cst_8 : f32 to vector<4x256xf32>
    %28 = arith.select %26, %24, %27 : vector<4x256xi1>, vector<4x256xf32>
    %cst_9 = arith.constant 0.000000e+00 : f32
    %29 = vector.shape_cast %20 : vector<1x256xi1> to vector<1x256xi1>
    %30 = vector.broadcast %29 : vector<1x256xi1> to vector<4x256xi1>
    %31 = vector.broadcast %cst_9 : f32 to vector<4x256xf32>
    %32 = arith.select %30, %24, %31 : vector<4x256xi1>, vector<4x256xf32>
    %c0_10 = arith.constant 0 : index
    %c34 = arith.constant 34 : index
    %33 = vector.load %arg7[%c0_10, %c34] : memref<36x290xf32, #tpu.memory_space<vmem>>, vector<4x256xf32>
    tpu.vector_store %arg7[%c0_10, %c34], %28 {strides = array<i32>} : memref<36x290xf32, #tpu.memory_space<vmem>>, vector<4x256xf32>,
    %c4 = arith.constant 4 : index
    %c33 = arith.constant 33 : index
    %34 = vector.load %arg7[%c4, %c33] : memref<36x290xf32, #tpu.memory_space<vmem>>, vector<4x256xf32>
    tpu.vector_store %arg7[%c4, %c33], %24 {strides = array<i32>} : memref<36x290xf32, #tpu.memory_space<vmem>>, vector<4x256xf32>,
    %c8 = arith.constant 8 : index
    %c32 = arith.constant 32 : index
    %35 = vector.load %arg7[%c8, %c32] : memref<36x290xf32, #tpu.memory_space<vmem>>, vector<4x256xf32>
    tpu.vector_store %arg7[%c8, %c32], %32 {strides = array<i32>} : memref<36x290xf32, #tpu.memory_space<vmem>>, vector<4x256xf32>,
    %c12 = arith.constant 12 : index
    %c18 = arith.constant 18 : index
    %36 = vector.load %arg7[%c12, %c18] : memref<36x290xf32, #tpu.memory_space<vmem>>, vector<4x256xf32>
    tpu.vector_store %arg7[%c12, %c18], %28 {strides = array<i32>} : memref<36x290xf32, #tpu.memory_space<vmem>>, vector<4x256xf32>,
    %c16 = arith.constant 16 : index
    %c17 = arith.constant 17 : index
    %37 = vector.load %arg7[%c16, %c17] : memref<36x290xf32, #tpu.memory_space<vmem>>, vector<4x256xf32>
    tpu.vector_store %arg7[%c16, %c17], %24 {strides = array<i32>} : memref<36x290xf32, #tpu.memory_space<vmem>>, vector<4x256xf32>,
    %c20 = arith.constant 20 : index
    %c16_11 = arith.constant 16 : index
    %38 = vector.load %arg7[%c20, %c16_11] : memref<36x290xf32, #tpu.memory_space<vmem>>, vector<4x256xf32>
    tpu.vector_store %arg7[%c20, %c16_11], %32 {strides = array<i32>} : memref<36x290xf32, #tpu.memory_space<vmem>>, vector<4x256xf32>,
    %c24 = arith.constant 24 : index
    %c2 = arith.constant 2 : index
    %39 = vector.load %arg7[%c24, %c2] : memref<36x290xf32, #tpu.memory_space<vmem>>, vector<4x256xf32>
    tpu.vector_store %arg7[%c24, %c2], %28 {strides = array<i32>} : memref<36x290xf32, #tpu.memory_space<vmem>>, vector<4x256xf32>,
    %c28 = arith.constant 28 : index
    %c1 = arith.constant 1 : index
    %40 = vector.load %arg7[%c28, %c1] : memref<36x290xf32, #tpu.memory_space<vmem>>, vector<4x256xf32>
    tpu.vector_store %arg7[%c28, %c1], %24 {strides = array<i32>} : memref<36x290xf32, #tpu.memory_space<vmem>>, vector<4x256xf32>,
    %c32_12 = arith.constant 32 : index
    %c0_13 = arith.constant 0 : index
    %41 = vector.load %arg7[%c32_12, %c0_13] : memref<36x290xf32, #tpu.memory_space<vmem>>, vector<4x256xf32>
    tpu.vector_store %arg7[%c32_12, %c0_13], %32 {strides = array<i32>} : memref<36x290xf32, #tpu.memory_space<vmem>>, vector<4x256xf32>,
    %c0_14 = arith.constant 0 : index
    %c17_15 = arith.constant 17 : index
    %42 = vector.load %arg7[%c0_14, %c17_15] : memref<36x290xf32, #tpu.memory_space<vmem>>, vector<36x256xf32>
    %c0_16 = arith.constant 0 : index
    %c0_17 = arith.constant 0 : index
    %43 = vector.load %arg2[%c0_16, %c0_17] : memref<4x36xf32, #tpu.memory_space<vmem>>, vector<4x36xf32>
    %cst_18 = arith.constant dense<0.000000e+00> : vector<4x256xf32>
    %44 = tpu.matmul %43, %42, %cst_18 {dimension_numbers = #tpu.dot_dimension_numbers<[1], [0], [0], [1], [0, 0, 1, 1], [], []>} : vector<4x36xf32>, vector<36x256xf32>, vector<4x256xf32> -> vector<4x256xf32>
    %c0_19 = arith.constant 0 : index
    %c0_20 = arith.constant 0 : index
    %45 = vector.load %arg3[%c0_19, %c0_20] : memref<4x1xf32, #tpu.memory_space<vmem>>, vector<4x1xf32>
    %46 = vector.broadcast %45 : vector<4x1xf32> to vector<4x256xf32>
    %47 = arith.addf %44, %46 : vector<4x256xf32>
    %cst_21 = arith.constant 0.000000e+00 : f32
    %48 = vector.broadcast %cst_21 : f32 to vector<4x256xf32>
    %49 = arith.maximumf %47, %48 : vector<4x256xf32>
    %cst_22 = arith.constant 0.000000e+00 : f32
    %50 = vector.shape_cast %18 : vector<1x256xi1> to vector<1x256xi1>
    %51 = vector.broadcast %50 : vector<1x256xi1> to vector<4x256xi1>
    %52 = vector.broadcast %cst_22 : f32 to vector<4x256xf32>
    %53 = arith.select %51, %49, %52 : vector<4x256xi1>, vector<4x256xf32>
    %cst_23 = arith.constant 0.000000e+00 : f32
    %54 = vector.shape_cast %20 : vector<1x256xi1> to vector<1x256xi1>
    %55 = vector.broadcast %54 : vector<1x256xi1> to vector<4x256xi1>
    %56 = vector.broadcast %cst_23 : f32 to vector<4x256xf32>
    %57 = arith.select %55, %49, %56 : vector<4x256xi1>, vector<4x256xf32>
    %c0_24 = arith.constant 0 : index
    %c34_25 = arith.constant 34 : index
    %58 = vector.load %arg7[%c0_24, %c34_25] : memref<36x290xf32, #tpu.memory_space<vmem>>, vector<4x256xf32>
    tpu.vector_store %arg7[%c0_24, %c34_25], %53 {strides = array<i32>} : memref<36x290xf32, #tpu.memory_space<vmem>>, vector<4x256xf32>,
    %c4_26 = arith.constant 4 : index
    %c33_27 = arith.constant 33 : index
    %59 = vector.load %arg7[%c4_26, %c33_27] : memref<36x290xf32, #tpu.memory_space<vmem>>, vector<4x256xf32>
    tpu.vector_store %arg7[%c4_26, %c33_27], %49 {strides = array<i32>} : memref<36x290xf32, #tpu.memory_space<vmem>>, vector<4x256xf32>,
    %c8_28 = arith.constant 8 : index
    %c32_29 = arith.constant 32 : index
    %60 = vector.load %arg7[%c8_28, %c32_29] : memref<36x290xf32, #tpu.memory_space<vmem>>, vector<4x256xf32>
    tpu.vector_store %arg7[%c8_28, %c32_29], %57 {strides = array<i32>} : memref<36x290xf32, #tpu.memory_space<vmem>>, vector<4x256xf32>,
    %c12_30 = arith.constant 12 : index
    %c18_31 = arith.constant 18 : index
    %61 = vector.load %arg7[%c12_30, %c18_31] : memref<36x290xf32, #tpu.memory_space<vmem>>, vector<4x256xf32>
    tpu.vector_store %arg7[%c12_30, %c18_31], %53 {strides = array<i32>} : memref<36x290xf32, #tpu.memory_space<vmem>>, vector<4x256xf32>,
    %c16_32 = arith.constant 16 : index
    %c17_33 = arith.constant 17 : index
    %62 = vector.load %arg7[%c16_32, %c17_33] : memref<36x290xf32, #tpu.memory_space<vmem>>, vector<4x256xf32>
    tpu.vector_store %arg7[%c16_32, %c17_33], %49 {strides = array<i32>} : memref<36x290xf32, #tpu.memory_space<vmem>>, vector<4x256xf32>,
    %c20_34 = arith.constant 20 : index
    %c16_35 = arith.constant 16 : index
    %63 = vector.load %arg7[%c20_34, %c16_35] : memref<36x290xf32, #tpu.memory_space<vmem>>, vector<4x256xf32>
    tpu.vector_store %arg7[%c20_34, %c16_35], %57 {strides = array<i32>} : memref<36x290xf32, #tpu.memory_space<vmem>>, vector<4x256xf32>,
    %c24_36 = arith.constant 24 : index
    %c2_37 = arith.constant 2 : index
    %64 = vector.load %arg7[%c24_36, %c2_37] : memref<36x290xf32, #tpu.memory_space<vmem>>, vector<4x256xf32>
    tpu.vector_store %arg7[%c24_36, %c2_37], %53 {strides = array<i32>} : memref<36x290xf32, #tpu.memory_space<vmem>>, vector<4x256xf32>,
    %c28_38 = arith.constant 28 : index
    %c1_39 = arith.constant 1 : index
    %65 = vector.load %arg7[%c28_38, %c1_39] : memref<36x290xf32, #tpu.memory_space<vmem>>, vector<4x256xf32>
    tpu.vector_store %arg7[%c28_38, %c1_39], %49 {strides = array<i32>} : memref<36x290xf32, #tpu.memory_space<vmem>>, vector<4x256xf32>,
    %c32_40 = arith.constant 32 : index
    %c0_41 = arith.constant 0 : index
    %66 = vector.load %arg7[%c32_40, %c0_41] : memref<36x290xf32, #tpu.memory_space<vmem>>, vector<4x256xf32>
    tpu.vector_store %arg7[%c32_40, %c0_41], %57 {strides = array<i32>} : memref<36x290xf32, #tpu.memory_space<vmem>>, vector<4x256xf32>,
    %c0_42 = arith.constant 0 : index
    %c17_43 = arith.constant 17 : index
    %67 = vector.load %arg7[%c0_42, %c17_43] : memref<36x290xf32, #tpu.memory_space<vmem>>, vector<36x256xf32>
    %c0_44 = arith.constant 0 : index
    %c0_45 = arith.constant 0 : index
    %68 = vector.load %arg4[%c0_44, %c0_45] : memref<4x36xf32, #tpu.memory_space<vmem>>, vector<4x36xf32>
    %cst_46 = arith.constant dense<0.000000e+00> : vector<4x256xf32>
    %69 = tpu.matmul %68, %67, %cst_46 {dimension_numbers = #tpu.dot_dimension_numbers<[1], [0], [0], [1], [0, 0, 1, 1], [], []>} : vector<4x36xf32>, vector<36x256xf32>, vector<4x256xf32> -> vector<4x256xf32>
    %c0_47 = arith.constant 0 : index
    %c0_48 = arith.constant 0 : index
    %70 = vector.load %arg5[%c0_47, %c0_48] : memref<4x1xf32, #tpu.memory_space<vmem>>, vector<4x1xf32>
    %71 = vector.broadcast %70 : vector<4x1xf32> to vector<4x256xf32>
    %72 = arith.addf %69, %71 : vector<4x256xf32>
    %73 = arith.addf %72, %24 : vector<4x256xf32>
    %cst_49 = arith.constant 0.000000e+00 : f32
    %74 = vector.broadcast %cst_49 : f32 to vector<4x256xf32>
    %75 = arith.maximumf %73, %74 : vector<4x256xf32>
    %c0_50 = arith.constant 0 : index
    %c0_51 = arith.constant 0 : index
    %c0_52 = arith.constant 0 : index
    %76 = vector.load %arg6[%c0_50, %c0_51, %c0_52] : memref<1x4x256xf32, #tpu.memory_space<vmem>>, vector<1x4x256xf32>
    %77 = vector.shape_cast %76 : vector<1x4x256xf32> to vector<4x256xf32>
    %78 = vector.shape_cast %75 : vector<4x256xf32> to vector<1x4x256xf32>
    tpu.vector_store %arg6[%c0_50, %c0_51, %c0_52], %78 {strides = array<i32>} : memref<1x4x256xf32, #tpu.memory_space<vmem>>, vector<1x4x256xf32>,
    return
  }
  func.func @transform_0(%arg0: i32) -> (i32, i32, i32) {
    %c0_i32 = arith.constant 0 : i32
    %c0_i32_0 = arith.constant 0 : i32
    %c0_i32_1 = arith.constant 0 : i32
    return %arg0, %c0_i32, %c0_i32_0 : i32, i32, i32
  }
  func.func @transform_1(%arg0: i32) -> (i32, i32) {
    %c0_i32 = arith.constant 0 : i32
    %c0_i32_0 = arith.constant 0 : i32
    %c0_i32_1 = arith.constant 0 : i32
    return %c0_i32, %c0_i32_0 : i32, i32
  }
  func.func @transform_2(%arg0: i32) -> (i32, i32) {
    %c0_i32 = arith.constant 0 : i32
    %c0_i32_0 = arith.constant 0 : i32
    %c0_i32_1 = arith.constant 0 : i32
    return %c0_i32, %c0_i32_0 : i32, i32
  }
  func.func @transform_3(%arg0: i32) -> (i32, i32) {
    %c0_i32 = arith.constant 0 : i32
    %c0_i32_0 = arith.constant 0 : i32
    %c0_i32_1 = arith.constant 0 : i32
    return %c0_i32, %c0_i32_0 : i32, i32
  }
  func.func @transform_4(%arg0: i32) -> (i32, i32) {
    %c0_i32 = arith.constant 0 : i32
    %c0_i32_0 = arith.constant 0 : i32
    %c0_i32_1 = arith.constant 0 : i32
    return %c0_i32, %c0_i32_0 : i32, i32
  }
  func.func @transform_5(%arg0: i32) -> (i32, i32, i32) {
    %c0_i32 = arith.constant 0 : i32
    %c0_i32_0 = arith.constant 0 : i32
    %c0_i32_1 = arith.constant 0 : i32
    return %arg0, %c0_i32, %c0_i32_0 : i32, i32, i32
  }
}

</mosaic_0001>

<llo_original>
// kernel: basic_block_forward.1
$region0: #{basic_block_forward.1}
  #allocation0 [shape = 'u32[]', space=smem, size = 0x4, offset = 0x4, fixed_abs, tag = 'smem constant byte address 0x4 - core index']
  #allocation1 [shape = 'u32[144,128]{1,0:T(1,128)}', space=vmem, size = 0x12000, scoped, tag = 'internal scratch']
  #allocation2 [shape = 'f32[36,290]{1,0:T(8,128)}', space=vmem, size = 0xf000, scoped, tag = 'scratch operand']
  %s0 = inlined_call_operand.vmem [shape: f32[2,4,256], index: 0, kind: input, shape index: {}]
  %s1 = inlined_call_operand.vmem [shape: f32[4,36], index: 1, kind: input, shape index: {}]
  %s2 = inlined_call_operand.vmem [shape: f32[4,1], index: 2, kind: input, shape index: {}]
  %s3 = inlined_call_operand.vmem [shape: f32[4,36], index: 3, kind: input, shape index: {}]
  %s4 = inlined_call_operand.vmem [shape: f32[4,1], index: 4, kind: input, shape index: {}]
  %s5 = inlined_call_operand.vmem [shape: f32[2,4,256], index: 5, kind: output, shape index: {}]
  %s6 = sld [smem:[#allocation0]]
  $region53: #{basic_block_forward.1} parent=0
    _
  %s8 = ssub.s32 1, %s6
  %s9 = scalar_select 0, %s8, %s6
  loop: start=0, step=1, limit=4
  $region2: #{basic_block_forward.1} parent=0 // loop_pre_header
    _
  $region3: #{basic_block_forward.1} parent=0 // loop_header
    %s11 = sphi 0, %s15
    %p12 = scmp.ge.s32.totalorder %s11, 4
    %s21 = sphi 0, %s23
    %s24 = sphi 0, %s21
    %s25 = sphi 0, %s24
    %s41 = sphi 0, %s25
    %s45 = sphi 0, %s45
    %s47 = sphi 0, %s45
    %s48 = sphi 0, %s47
    %s62 = sphi 0, %s48
    %s66 = sphi 0, %s66
    %s68 = sphi 0, %s66
    %s69 = sphi 0, %s68
    %s83 = sphi 0, %s69
    %s87 = sphi 0, %s87
    %s89 = sphi 0, %s87
    %s90 = sphi 0, %s89
    %s104 = sphi 0, %s90
    %s108 = sphi 0, %s108
    %s110 = sphi 0, %s108
    %s111 = sphi 0, %s110
    %s125 = sphi 0, %s111
    %s131 = sphi 0, %s133
    %s134 = sphi 0, %s131
    %s135 = sphi 0, %s134
    %s151 = sphi 0, %s135
  $region4: #{basic_block_forward.1} parent=0 // loop_header_branch
    %14 = sbr.rel (%p12) target = $region8
  $region5: #{basic_block_forward.1} parent=0 // loop_body
    %s16 = ssub.s32 %s11, 1
    %s17 = ssub.s32 %s11, 2
    %s18 = sadd.s32 %s11, 1
    %s19 = ssub.s32 %s11, %s18
    %p20 = scmp.eq.s32.totalorder %s19, 0
    %s22 = sadd.s32 %s21, 1
    %s23 = scalar_select %p20, %s21, %s22
    %p26 = pneg %p20
    %p27 = scmp.eq.s32.totalorder %s11, 1
    %p28 = por %p26, %p27
    %p29 = scmp.ne.s32.totalorder %s21, %s24
    %p30 = scmp.eq.s32.totalorder %s11, 0
    %p31 = por %p29, %p30
    %p32 = scmp.ne.s32.totalorder %s21, %s24
    %p33 = scmp.eq.s32.totalorder %s16, 1
    %p34 = por %p32, %p33
    %p35 = scmp.ne.s32.totalorder %s24, %s25
    %p36 = scmp.eq.s32.totalorder %s16, 0
    %p37 = por %p35, %p36
    %p38 = scmp.ne.s32.totalorder %s24, %s25
    %p39 = scmp.eq.s32.totalorder %s17, 1
    %p40 = por %p38, %p39
    %p42 = scmp.ne.s32.totalorder %s25, %s41
    %p43 = scmp.eq.s32.totalorder %s17, 0
    %p44 = por %p42, %p43
    %s46 = sadd.s32 %s45, 1
    %p49 = scmp.eq.s32.totalorder %s11, 1
    %p50 = scmp.ne.s32.totalorder %s45, %s47
    %p51 = scmp.eq.s32.totalorder %s11, 0
    %p52 = por %p50, %p51
    %p53 = scmp.ne.s32.totalorder %s45, %s47
    %p54 = scmp.eq.s32.totalorder %s16, 1
    %p55 = por %p53, %p54
    %p56 = scmp.ne.s32.totalorder %s47, %s48
    %p57 = scmp.eq.s32.totalorder %s16, 0
    %p58 = por %p56, %p57
    %p59 = scmp.ne.s32.totalorder %s47, %s48
    %p60 = scmp.eq.s32.totalorder %s17, 1
    %p61 = por %p59, %p60
    %p63 = scmp.ne.s32.totalorder %s48, %s62
    %p64 = scmp.eq.s32.totalorder %s17, 0
    %p65 = por %p63, %p64
    %s67 = sadd.s32 %s66, 1
    %p70 = scmp.eq.s32.totalorder %s11, 1
    %p71 = scmp.ne.s32.totalorder %s66, %s68
    %p72 = scmp.eq.s32.totalorder %s11, 0
    %p73 = por %p71, %p72
    %p74 = scmp.ne.s32.totalorder %s66, %s68
    %p75 = scmp.eq.s32.totalorder %s16, 1
    %p76 = por %p74, %p75
    %p77 = scmp.ne.s32.totalorder %s68, %s69
    %p78 = scmp.eq.s32.totalorder %s16, 0
    %p79 = por %p77, %p78
    %p80 = scmp.ne.s32.totalorder %s68, %s69
    %p81 = scmp.eq.s32.totalorder %s17, 1
    %p82 = por %p80, %p81
    %p84 = scmp.ne.s32.totalorder %s69, %s83
    %p85 = scmp.eq.s32.totalorder %s17, 0
    %p86 = por %p84, %p85
    %s88 = sadd.s32 %s87, 1
    %p91 = scmp.eq.s32.totalorder %s11, 1
    %p92 = scmp.ne.s32.totalorder %s87, %s89
    %p93 = scmp.eq.s32.totalorder %s11, 0
    %p94 = por %p92, %p93
    %p95 = scmp.ne.s32.totalorder %s87, %s89
    %p96 = scmp.eq.s32.totalorder %s16, 1
    %p97 = por %p95, %p96
    %p98 = scmp.ne.s32.totalorder %s89, %s90
    %p99 = scmp.eq.s32.totalorder %s16, 0
    %p100 = por %p98, %p99
    %p101 = scmp.ne.s32.totalorder %s89, %s90
    %p102 = scmp.eq.s32.totalorder %s17, 1
    %p103 = por %p101, %p102
    %p105 = scmp.ne.s32.totalorder %s90, %s104
    %p106 = scmp.eq.s32.totalorder %s17, 0
    %p107 = por %p105, %p106
    %s109 = sadd.s32 %s108, 1
    %p112 = scmp.eq.s32.totalorder %s11, 1
    %p113 = scmp.ne.s32.totalorder %s108, %s110
    %p114 = scmp.eq.s32.totalorder %s11, 0
    %p115 = por %p113, %p114
    %p116 = scmp.ne.s32.totalorder %s108, %s110
    %p117 = scmp.eq.s32.totalorder %s16, 1
    %p118 = por %p116, %p117
    %p119 = scmp.ne.s32.totalorder %s110, %s111
    %p120 = scmp.eq.s32.totalorder %s16, 0
    %p121 = por %p119, %p120
    %p122 = scmp.ne.s32.totalorder %s110, %s111
    %p123 = scmp.eq.s32.totalorder %s17, 1
    %p124 = por %p122, %p123
    %p126 = scmp.ne.s32.totalorder %s111, %s125
    %p127 = scmp.eq.s32.totalorder %s17, 0
    %p128 = por %p126, %p127
    %s129 = ssub.s32 %s11, %s18
    %p130 = scmp.eq.s32.totalorder %s129, 0
    %s132 = sadd.s32 %s131, 1
    %s133 = scalar_select %p130, %s131, %s132
    %p136 = pneg %p130
    %p137 = scmp.eq.s32.totalorder %s11, 1
    %p138 = por %p136, %p137
    %p139 = scmp.ne.s32.totalorder %s131, %s134
    %p140 = scmp.eq.s32.totalorder %s11, 0
    %p141 = por %p139, %p140
    %p142 = scmp.ne.s32.totalorder %s131, %s134
    %p143 = scmp.eq.s32.totalorder %s16, 1
    %p144 = por %p142, %p143
    %p145 = scmp.ne.s32.totalorder %s134, %s135
    %p146 = scmp.eq.s32.totalorder %s16, 0
    %p147 = por %p145, %p146
    %p148 = scmp.ne.s32.totalorder %s134, %s135
    %p149 = scmp.eq.s32.totalorder %s17, 1
    %p150 = por %p148, %p149
    %p152 = scmp.ne.s32.totalorder %s135, %s151
    %p153 = scmp.eq.s32.totalorder %s17, 0
    %p154 = por %p152, %p153
    %p155 = scmp.le.s32.totalorder 1, %s11
    %p156 = scmp.lt.s32.totalorder %s11, 3
    %p157 = pnand %p155, %p156
    %p158 = pneg %p157
    // Predicated region
    $region9: #{basic_block_forward.1} parent=5 // pred_check
      _
    $region10: #{basic_block_forward.1} parent=5 // pred_check_branch
      %160 = sbr.rel (%p157) target = $region12
    $region11: #{basic_block_forward.1} parent=5 // pred_region
      %s161 = ssub.s32 %s11, 1
      // Predicated region
      $region13: #{basic_block_forward.1} parent=11 // pred_check
        %p162 = pneg %p58
      $region14: #{basic_block_forward.1} parent=11 // pred_check_branch
        %164 = sbr.rel (%p162) target = $region16
      $region15: #{basic_block_forward.1} parent=11 // pred_region
        _
      $region16: #{basic_block_forward.1} parent=11 // pred_fallthru
        _
      // Predicated region
      $region17: #{basic_block_forward.1} parent=11 // pred_check
        %p165 = pneg %p79
      $region18: #{basic_block_forward.1} parent=11 // pred_check_branch
        %167 = sbr.rel (%p165) target = $region20
      $region19: #{basic_block_forward.1} parent=11 // pred_region
        _
      $region20: #{basic_block_forward.1} parent=11 // pred_fallthru
        _
      // Predicated region
      $region21: #{basic_block_forward.1} parent=11 // pred_check
        %p168 = pneg %p100
      $region22: #{basic_block_forward.1} parent=11 // pred_check_branch
        %170 = sbr.rel (%p168) target = $region24
      $region23: #{basic_block_forward.1} parent=11 // pred_region
        _
      $region24: #{basic_block_forward.1} parent=11 // pred_fallthru
        _
      // Predicated region
      $region25: #{basic_block_forward.1} parent=11 // pred_check
        %p171 = pneg %p121
      $region26: #{basic_block_forward.1} parent=11 // pred_check_branch
        %173 = sbr.rel (%p171) target = $region28
      $region27: #{basic_block_forward.1} parent=11 // pred_region
        _
      $region28: #{basic_block_forward.1} parent=11 // pred_fallthru
        _
    $region12: #{basic_block_forward.1} parent=5 // pred_fallthru
      _
    %p174 = scmp.lt.s32.totalorder %s11, 2
    // Predicated region
    $region29: #{basic_block_forward.1} parent=5 // pred_check
      %p175 = pneg %p174
    $region30: #{basic_block_forward.1} parent=5 // pred_check_branch
      %177 = sbr.rel (%p175) target = $region32
    $region31: #{basic_block_forward.1} parent=5 // pred_region
      // Predicated region
      $region33: #{basic_block_forward.1} parent=31 // pred_check
        %p178 = pneg %p31
      $region34: #{basic_block_forward.1} parent=31 // pred_check_branch
        %180 = sbr.rel (%p178) target = $region36
      $region35: #{basic_block_forward.1} parent=31 // pred_region
        %p181 = scmp.lt.s32.totalorder %s11, 1
        %s182 = scalar_select %p181, %s11, 1
        %s183 = smul.addr %s182, 2
        %s184 = smul.addr %s183, 4
        %s185 = scalar_lea.vmem %s0, %s184
      $region36: #{basic_block_forward.1} parent=31 // pred_fallthru
        _
    $region32: #{basic_block_forward.1} parent=5 // pred_fallthru
      _
    %p186 = scmp.le.s32.totalorder 1, %s11
    %p187 = scmp.lt.s32.totalorder %s11, 3
    %p188 = pnand %p186, %p187
    %p189 = pneg %p188
    // Predicated region
    $region37: #{basic_block_forward.1} parent=5 // pred_check
      _
    $region38: #{basic_block_forward.1} parent=5 // pred_check_branch
      %191 = sbr.rel (%p188) target = $region40
    $region39: #{basic_block_forward.1} parent=5 // pred_region
      %s192 = ssub.s32 %s11, 1
      %p193 = scmp.lt.s32.totalorder %s16, 1
      %s194 = scalar_select %p193, %s16, 1
      %s195 = smul.addr %s194, 2
      %s196 = smul.addr %s195, 4
      %s197 = scalar_lea.vmem %s0, %s196
      %p198 = pneg %p37
      %p199 = pneg %p34
      %p200 = pneg %p58
      %p201 = pneg %p55
      %p202 = pneg %p79
      %p203 = pneg %p76
      %p204 = pneg %p100
      %p205 = pneg %p97
      %p206 = pneg %p121
      %p207 = pneg %p118
      %p208 = pneg %p147
      %p209 = pneg %p144
      %p210 = scmp.lt.s32.totalorder %s16, 1
      %s211 = scalar_select %p210, %s16, 1
      %s212 = smul.addr %s211, 2
      %s213 = smul.addr %s212, 4
      %s214 = scalar_lea.vmem %s5, %s213
      %p215 = scmp.lt.s32.totalorder %s16, 1
      %s216 = scalar_select %p215, %s16, 1
      %s217 = smul.addr %s216, 2
      %s218 = smul.addr %s217, 4
      %s219 = scalar_lea.vmem %s0, %s218
      %p220 = scmp.lt.s32.totalorder %s16, 1
      %s221 = scalar_select %p220, %s16, 1
      %s222 = smul.addr %s221, 2
      %s223 = smul.addr %s222, 4
      %s224 = scalar_lea.vmem %s5, %s223
      %v225 = vlaneseq
      %v226 = vand.u32 %v225, 127
      %v227 = vadd.s32 %v226, 128
      %vm228 = vcmp.lt.s32.totalorder %v226, 0
      %v229 = vsub.s32 0, %v226
      %v230 = vsel %vm228, %v229, %v226
      %v231 = vshrl.u32 %v230, 4
      %v232 = vand.u32 %v230, 15
      %v233 = vsub.s32 0, %v232
      %v234 = vsel %vm228, %v233, %v232
      %vm235 = vcmp.lt.s32.totalorder %v227, 0
      %v236 = vsub.s32 0, %v227
      %v237 = vsel %vm235, %v236, %v227
      %v238 = vshrl.u32 %v237, 4
      %v239 = vand.u32 %v237, 15
      %v240 = vsub.s32 0, %v239
      %v241 = vsel %vm235, %v240, %v239
      %vm242 = vcmp.ne.s32.totalorder %v234, 0
      %vm243 = vcmp.ne.s32.totalorder %v241, 0
      %vm244 = vcmp.lt.s32.totalorder %v234, 0
      %vm245 = vcmp.lt.s32.totalorder %v241, 0
      %vm246 = vmand %vm244, %vm242
      %vm247 = vmand %vm245, %vm243
      %v248 = vadd.s32 %v234, 16
      %v249 = vadd.s32 %v241, 16
      %v250 = vsel %vm246, %v248, %v234
      %v251 = vsel %vm247, %v249, %v241
      %vm252 = vcmp.lt.s32.totalorder %v250, 15
      %vm253 = vcmp.lt.s32.totalorder %v251, 15
      %vm254 = vcmp.ge.s32.totalorder %v250, 1
      %vm255 = vcmp.ge.s32.totalorder %v251, 1
      %256 = vst [vmem:[#allocation2] sm:$0xff] 0.0
      %257 = vst [vmem:[#allocation2 + $0x8] sm:$0xff] 0.0
      %vm258 = vcmask 277504
      %259 = vst.msk [vmem:[#allocation2 + $0x10] sm:$0xff] %vm258, 0.0
      %260 = vst [vmem:[#allocation2 + $0x18] sm:$0xff] 0.0
      %261 = vst [vmem:[#allocation2 + $0x20] sm:$0xff] 0.0
      %262 = vst.msk [vmem:[#allocation2 + $0x28] sm:$0xff] %vm258, 0.0
      %263 = vst [vmem:[#allocation2 + $0x30] sm:$0xff] 0.0
      %264 = vst [vmem:[#allocation2 + $0x38] sm:$0xff] 0.0
      %265 = vst.msk [vmem:[#allocation2 + $0x40] sm:$0xff] %vm258, 0.0
      %266 = vst [vmem:[#allocation2 + $0x48] sm:$0xff] 0.0
      %267 = vst [vmem:[#allocation2 + $0x50] sm:$0xff] 0.0
      %268 = vst.msk [vmem:[#allocation2 + $0x58] sm:$0xff] %vm258, 0.0
      %269 = vst [vmem:[#allocation2 + $0x60] sm:$0xf] 0.0
      %270 = vst [vmem:[#allocation2 + $0x68] sm:$0xf] 0.0
      %vm271 = vcmask 273408
      %272 = vst.msk [vmem:[#allocation2 + $0x70] sm:$0xf] %vm271, 0.0
      %v273 = vld [vmem:[%s219] sm:$0xff]
      %v274 = vsel %vm252, 1, 0
      %v275 = vsel %vm253, 1, 0
      %vm276 = vcmp.eq.s32.totalorder %v274, 1
      %vm277 = vcmp.eq.s32.totalorder %v275, 1
      %v279 = vcombine.high %v273, %v273
      %v281 = vsel %vm276, %v273, 0.0
      %v282 = vsel %vm277, %v279, 0.0
      %v283 = vsel %vm254, 1, 0
      %v284 = vsel %vm255, 1, 0
      %vm285 = vcmp.eq.s32.totalorder %v283, 1
      %vm286 = vcmp.eq.s32.totalorder %v284, 1
      %v287 = vsel %vm285, %v273, 0.0
      %v288 = vsel %vm286, %v279, 0.0
      %291 = vrot.lane.b32.xlu0 %v281, 34
      %v292 = vpop.permute.xlu0 %291
      %293 = vrot.lane.b32.xlu0 %v282, 34
      %v294 = vpop.permute.xlu0 %293
      %v295 = vsel %vm258, %v292, %v294
      %vm299 = vcmask 1043728
      %300 = vst.msk [vmem:[#allocation2] sm:$0xf] %vm299, %v292
      %301 = vst [vmem:[#allocation2 + $0x8] sm:$0xf] %v295
      %302 = vst.msk [vmem:[#allocation2 + $0x10] sm:$0xf] %vm271, %v294
      %v303 = vcombine.low %v273, %v273
      %304 = vrot.lane.b32.xlu0 %v303, 33
      %v305 = vpop.permute.xlu0 %304
      %306 = vrot.lane.b32.xlu0 %v273, 33
      %v307 = vpop.permute.xlu0 %306
      %vm308 = vcmask 269312
      %v309 = vsel %vm308, %v305, %v307
      %vm313 = vcmask 1047820
      %314 = vst.msk [vmem:[#allocation2] sm:$0xf0] %vm313, %v305
      %315 = vst [vmem:[#allocation2 + $0x8] sm:$0xf0] %v309
      %vm316 = vcmask 269316
      %317 = vst.msk [vmem:[#allocation2 + $0x10] sm:$0xf0] %vm316, %v307
      %320 = vrot.lane.b32.xlu0 %v287, 32
      %v321 = vpop.permute.xlu0 %320
      %322 = vrot.lane.b32.xlu0 %v288, 32
      %v323 = vpop.permute.xlu0 %322
      %vm324 = vcmask 261120
      %v325 = vsel %vm324, %v321, %v323
      %vm329 = vcmask 1043712
      %330 = vst.msk [vmem:[#allocation2 + $0x18] sm:$0xf] %vm329, %v321
      %331 = vst [vmem:[#allocation2 + $0x20] sm:$0xf] %v325
      %vm332 = vcmask 257024
      %333 = vst.msk [vmem:[#allocation2 + $0x28] sm:$0xf] %vm332, %v323
      %v334 = vrot.slane %v281, 4
      %v335 = vrot.slane %v282, 4
      %336 = vrot.lane.b32.xlu0 %v334, 18
      %v337 = vpop.permute.xlu0 %336
      %338 = vrot.lane.b32.xlu0 %v335, 18
      %v339 = vpop.permute.xlu0 %338
      %vm340 = vcmask 146432
      %v341 = vsel %vm340, %v337, %v339
      %vm345 = vcmask 1047700
      %346 = vst.msk [vmem:[#allocation2 + $0x18] sm:$0xf0] %vm345, %v337
      %347 = vst [vmem:[#allocation2 + $0x20] sm:$0xf0] %v341
      %vm348 = vcmask 146436
      %349 = vst.msk [vmem:[#allocation2 + $0x28] sm:$0xf0] %vm348, %v339
      %350 = vrot.lane.b32.xlu0 %v273, 17
      %v351 = vpop.permute.xlu0 %350
      %352 = vrot.lane.b32.xlu0 %v279, 17
      %v353 = vpop.permute.xlu0 %352
      %vm354 = vcmask 138240
      %v355 = vsel %vm354, %v351, %v353
      %vm359 = vcmask 1043592
      %360 = vst.msk [vmem:[#allocation2 + $0x30] sm:$0xf] %vm359, %v351
      %361 = vst [vmem:[#allocation2 + $0x38] sm:$0xf] %v355
      %vm362 = vcmask 134144
      %363 = vst.msk [vmem:[#allocation2 + $0x40] sm:$0xf] %vm362, %v353
      %v364 = vrot.slane %v287, 4
      %v365 = vrot.slane %v288, 4
      %366 = vrot.lane.b32.xlu0 %v364, 16
      %v367 = vpop.permute.xlu0 %366
      %368 = vrot.lane.b32.xlu0 %v365, 16
      %v369 = vpop.permute.xlu0 %368
      %vm370 = vcmask 130048
      %v371 = vsel %vm370, %v367, %v369
      %vm375 = vcmask 1047684
      %376 = vst.msk [vmem:[#allocation2 + $0x30] sm:$0xf0] %vm375, %v367
      %377 = vst [vmem:[#allocation2 + $0x38] sm:$0xf0] %v371
      %vm378 = vcmask 130052
      %379 = vst.msk [vmem:[#allocation2 + $0x40] sm:$0xf0] %vm378, %v369
      %380 = vrot.lane.b32.xlu0 %v281, 2
      %v381 = vpop.permute.xlu0 %380
      %382 = vrot.lane.b32.xlu0 %v282, 2
      %v383 = vpop.permute.xlu0 %382
      %vm384 = vcmask 15360
      %v385 = vsel %vm384, %v381, %v383
      %vm389 = vcmask 1043472
      %390 = vst.msk [vmem:[#allocation2 + $0x48] sm:$0xf] %vm389, %v381
      %391 = vst [vmem:[#allocation2 + $0x50] sm:$0xf] %v385
      %vm392 = vcmask 11264
      %393 = vst.msk [vmem:[#allocation2 + $0x58] sm:$0xf] %vm392, %v383
      %394 = vrot.lane.b32.xlu0 %v303, 1
      %v395 = vpop.permute.xlu0 %394
      %396 = vrot.lane.b32.xlu0 %v273, 1
      %v397 = vpop.permute.xlu0 %396
      %vm398 = vcmask 7168
      %v399 = vsel %vm398, %v395, %v397
      %vm403 = vcmask 1047564
      %404 = vst.msk [vmem:[#allocation2 + $0x48] sm:$0xf0] %vm403, %v395
      %405 = vst [vmem:[#allocation2 + $0x50] sm:$0xf0] %v399
      %vm406 = vcmask 7172
      %407 = vst.msk [vmem:[#allocation2 + $0x58] sm:$0xf0] %vm406, %v397
      %408 = vst [vmem:[#allocation2 + $0x60] sm:$0xf] %v287
      %409 = vst [vmem:[#allocation2 + $0x68] sm:$0xf] %v288
      %v410 = vld [vmem:[#allocation2] sm:$0xff]
      %v411 = vld [vmem:[#allocation2 + $0x8] sm:$0xff]
      %v412 = vld [vmem:[#allocation2 + $0x10] sm:$0xff]
      %v413 = vld [vmem:[#allocation2 + $0x18] sm:$0xff]
      %v414 = vld [vmem:[#allocation2 + $0x20] sm:$0xff]
      %v415 = vld [vmem:[#allocation2 + $0x28] sm:$0xff]
      %v416 = vld [vmem:[#allocation2 + $0x30] sm:$0xff]
      %v417 = vld [vmem:[#allocation2 + $0x38] sm:$0xff]
      %v418 = vld [vmem:[#allocation2 + $0x40] sm:$0xff]
      %v419 = vld [vmem:[#allocation2 + $0x48] sm:$0xff]
      %v420 = vld [vmem:[#allocation2 + $0x50] sm:$0xff]
      %v421 = vld [vmem:[#allocation2 + $0x58] sm:$0xff]
      %v422 = vld [vmem:[#allocation2 + $0x60] sm:$0xf]
      %v423 = vld [vmem:[#allocation2 + $0x68] sm:$0xf]
      %v424 = vld [vmem:[#allocation2 + $0x70] sm:$0xf]
      %v425 = vld [vmem:[%s1] sm:$0xf]
      %v426 = vld [vmem:[%s2] sm:$0xf]
      %428 = vset.pattern.permute.xlu0 0
      %429 = vperm.xlu0 %428, %v426
      %v430 = vpop.permute.xlu0 %429
      %447 = vrot.lane.b32.xlu0 %v410, 111
      %v448 = vpop.permute.xlu0 %447
      %449 = vrot.lane.b32.xlu0 %v411, 111
      %v450 = vpop.permute.xlu0 %449
      %451 = vrot.lane.b32.xlu0 %v412, 111
      %v452 = vpop.permute.xlu0 %451
      %453 = vrot.lane.b32.xlu0 %v413, 111
      %v454 = vpop.permute.xlu0 %453
      %455 = vrot.lane.b32.xlu0 %v414, 111
      %v456 = vpop.permute.xlu0 %455
      %457 = vrot.lane.b32.xlu0 %v415, 111
      %v458 = vpop.permute.xlu0 %457
      %459 = vrot.lane.b32.xlu0 %v416, 111
      %v460 = vpop.permute.xlu0 %459
      %461 = vrot.lane.b32.xlu0 %v417, 111
      %v462 = vpop.permute.xlu0 %461
      %463 = vrot.lane.b32.xlu0 %v418, 111
      %v464 = vpop.permute.xlu0 %463
      %465 = vrot.lane.b32.xlu0 %v419, 111
      %v466 = vpop.permute.xlu0 %465
      %467 = vrot.lane.b32.xlu0 %v420, 111
      %v468 = vpop.permute.xlu0 %467
      %469 = vrot.lane.b32.xlu0 %v421, 111
      %v470 = vpop.permute.xlu0 %469
      %471 = vrot.lane.b32.xlu0 %v422, 111
      %v472 = vpop.permute.xlu0 %471
      %473 = vrot.lane.b32.xlu0 %v423, 111
      %v474 = vpop.permute.xlu0 %473
      %475 = vrot.lane.b32.xlu0 %v424, 111
      %v476 = vpop.permute.xlu0 %475
      %vm477 = vcmask 908288
      %v478 = vsel %vm477, %v448, %v450
      %v479 = vsel %vm477, %v450, %v452
      %v480 = vsel %vm477, %v454, %v456
      %v481 = vsel %vm477, %v456, %v458
      %v482 = vsel %vm477, %v460, %v462
      %v483 = vsel %vm477, %v462, %v464
      %v484 = vsel %vm477, %v466, %v468
      %v485 = vsel %vm477, %v468, %v470
      %v486 = vsel %vm477, %v472, %v474
      %v487 = vsel %vm477, %v474, %v476
      %vm496 = vcmask 293888
      %v498 = vsel %vm496, %v425, 0
      %vm500 = vcmask 1043456
      %v501 = vsel %vm500, %v486, 0
      %v503 = vsel %vm500, %v487, 0
      %505 = vmatprep.subr.mxu0 %v479
      %506 = vmatpush1.msra.mxu0 %v478
      %507 = vmatprep.subr.mxu0 %v481
      %508 = vmatpush1.msra.mxu0 %v480
      %509 = vmatprep.subr.mxu0 %v483
      %510 = vmatpush1.msra.mxu0 %v482
      %511 = vmatprep.subr.mxu0 %v485
      %512 = vmatpush1.msra.mxu0 %v484
      %513 = vmatprep.subr.mxu0 %v503
      %514 = vmatpush1.msra.mxu0 %v501
      %515 = vmatprep.subr.mxu0 0.0
      %516 = vmatpush1.msra.mxu0 0.0
      %517 = vmatprep.subr.mxu0 0.0
      %518 = vmatpush1.msra.mxu0 0.0
      %519 = vmatprep.subr.mxu0 0.0
      %520 = vmatpush1.msra.mxu0 0.0
      %521 = vmatprep.subr.mxu0 0.0
      %522 = vmatpush1.msra.mxu0 0.0
      %523 = vmatprep.subr.mxu0 0.0
      %524 = vmatpush1.msra.mxu0 0.0
      %525 = vmatprep.subr.mxu0 0.0
      %526 = vmatpush1.msra.mxu0 0.0
      %527 = vmatprep.subr.mxu0 0.0
      %528 = vmatpush1.msra.mxu0 0.0
      %529 = vmatprep.subr.mxu0 0.0
      %530 = vmatpush1.msra.mxu0 0.0
      %531 = vmatprep.subr.mxu0 0.0
      %532 = vmatpush1.msra.mxu0 0.0
      %533 = vmatprep.subr.mxu0 0.0
      %534 = vmatpush1.msra.mxu0 0.0
      %535 = vmatprep.subr.mxu0 0.0
      %536 = vmatpush1.msra.mxu0 0.0
      %537 = vmatprep.subr.mxu0 0.0
      %538 = vmatpush1.msra.mxu0 0.0
      %539 = vmatprep.subr.mxu0 0.0
      %540 = vmatpush1.msra.mxu0 0.0
      %541 = vmatprep.subr.mxu0 0.0
      %542 = vmatpush1.msra.mxu0 0.0
      %543 = vmatprep.subr.mxu0 0.0
      %544 = vmatpush1.msra.mxu0 0.0
      %545 = vmatprep.subr.mxu0 0.0
      %546 = vmatpush1.msra.mxu0 0.0
      %547 = vmatprep.subr.mxu0 0.0
      %548 = vmatpush1.msra.mxu0 0.0
      %549 = vmatprep.subr.mxu0 0.0
      %550 = vmatpush1.msra.mxu0 0.0
      %551 = vmatprep.subr.mxu0 0.0
      %552 = vmatpush1.msra.mxu0 0.0
      %553 = vmatprep.subr.mxu0 0.0
      %554 = vmatpush1.msra.mxu0 0.0
      %555 = vmatprep.subr.mxu0 0.0
      %556 = vmatpush1.msra.mxu0 0.0
      %557 = vmatprep.subr.mxu0 0.0
      %558 = vmatpush1.msra.mxu0 0.0
      %559 = vmatprep.subr.mxu0 0.0
      %560 = vmatpush1.msra.mxu0 0.0
      %561 = vmatprep.subr.mxu0 0.0
      %562 = vmatpush1.msra.mxu0 0.0
      %563 = vmatprep.subr.mxu0 0.0
      %564 = vmatpush1.msra.mxu0 0.0
      %565 = vmatprep.subr.mxu0 0.0
      %566 = vmatpush1.msra.mxu0 0.0
      %567 = vmatprep.subr.mxu0 0.0
      %568 = vmatpush1.msra.mxu0 0.0
      %569 = vmatprep.mubr.f32.mxu0 0.0
      %570 = vmatmul.mubr.f32.gmra.mrb[0].mxu0 %v498
      %v571 = vpop.f32.mrb[0].mxu0
      %v572 = vadd.f32 %v430, %v571
      %v573 = vpop.f32.mrb[0].mxu0
      %v574 = vadd.f32 %v430, %v573
      %575 = vdwg.mxu0
      %v576 = vmax.f32 %v572, 0.0
      %v577 = vmax.f32 %v574, 0.0
      %v578 = vsel %vm276, %v576, 0.0
      %v579 = vsel %vm277, %v577, 0.0
      %v580 = vsel %vm285, %v576, 0.0
      %v581 = vsel %vm286, %v577, 0.0
      %584 = vrot.lane.b32.xlu0 %v578, 34
      %v585 = vpop.permute.xlu0 %584
      %586 = vrot.lane.b32.xlu0 %v579, 34
      %v587 = vpop.permute.xlu0 %586
      %v588 = vsel %vm258, %v585, %v587
      %592 = vst.msk [vmem:[#allocation2] sm:$0xf] %vm299, %v585
      %593 = vst [vmem:[#allocation2 + $0x8] sm:$0xf] %v588
      %594 = vst.msk [vmem:[#allocation2 + $0x10] sm:$0xf] %vm271, %v587
      %v597 = vrot.slane %v576, 4
      %v598 = vrot.slane %v577, 4
      %599 = vrot.lane.b32.xlu0 %v597, 33
      %v600 = vpop.permute.xlu0 %599
      %601 = vrot.lane.b32.xlu0 %v598, 33
      %v602 = vpop.permute.xlu0 %601
      %v603 = vsel %vm308, %v600, %v602
      %607 = vst.msk [vmem:[#allocation2] sm:$0xf0] %vm313, %v600
      %608 = vst [vmem:[#allocation2 + $0x8] sm:$0xf0] %v603
      %609 = vst.msk [vmem:[#allocation2 + $0x10] sm:$0xf0] %vm316, %v602
      %612 = vrot.lane.b32.xlu0 %v580, 32
      %v613 = vpop.permute.xlu0 %612
      %614 = vrot.lane.b32.xlu0 %v581, 32
      %v615 = vpop.permute.xlu0 %614
      %v616 = vsel %vm324, %v613, %v615
      %620 = vst.msk [vmem:[#allocation2 + $0x18] sm:$0xf] %vm329, %v613
      %621 = vst [vmem:[#allocation2 + $0x20] sm:$0xf] %v616
      %622 = vst.msk [vmem:[#allocation2 + $0x28] sm:$0xf] %vm332, %v615
      %v623 = vrot.slane %v578, 4
      %v624 = vrot.slane %v579, 4
      %625 = vrot.lane.b32.xlu0 %v623, 18
      %v626 = vpop.permute.xlu0 %625
      %627 = vrot.lane.b32.xlu0 %v624, 18
      %v628 = vpop.permute.xlu0 %627
      %v629 = vsel %vm340, %v626, %v628
      %633 = vst.msk [vmem:[#allocation2 + $0x18] sm:$0xf0] %vm345, %v626
      %634 = vst [vmem:[#allocation2 + $0x20] sm:$0xf0] %v629
      %635 = vst.msk [vmem:[#allocation2 + $0x28] sm:$0xf0] %vm348, %v628
      %636 = vrot.lane.b32.xlu0 %v576, 17
      %v637 = vpop.permute.xlu0 %636
      %638 = vrot.lane.b32.xlu0 %v577, 17
      %v639 = vpop.permute.xlu0 %638
      %v640 = vsel %vm354, %v637, %v639
      %644 = vst.msk [vmem:[#allocation2 + $0x30] sm:$0xf] %vm359, %v637
      %645 = vst [vmem:[#allocation2 + $0x38] sm:$0xf] %v640
      %646 = vst.msk [vmem:[#allocation2 + $0x40] sm:$0xf] %vm362, %v639
      %v647 = vrot.slane %v580, 4
      %v648 = vrot.slane %v581, 4
      %649 = vrot.lane.b32.xlu0 %v647, 16
      %v650 = vpop.permute.xlu0 %649
      %651 = vrot.lane.b32.xlu0 %v648, 16
      %v652 = vpop.permute.xlu0 %651
      %v653 = vsel %vm370, %v650, %v652
      %657 = vst.msk [vmem:[#allocation2 + $0x30] sm:$0xf0] %vm375, %v650
      %658 = vst [vmem:[#allocation2 + $0x38] sm:$0xf0] %v653
      %659 = vst.msk [vmem:[#allocation2 + $0x40] sm:$0xf0] %vm378, %v652
      %660 = vrot.lane.b32.xlu0 %v578, 2
      %v661 = vpop.permute.xlu0 %660
      %662 = vrot.lane.b32.xlu0 %v579, 2
      %v663 = vpop.permute.xlu0 %662
      %v664 = vsel %vm384, %v661, %v663
      %668 = vst.msk [vmem:[#allocation2 + $0x48] sm:$0xf] %vm389, %v661
      %669 = vst [vmem:[#allocation2 + $0x50] sm:$0xf] %v664
      %670 = vst.msk [vmem:[#allocation2 + $0x58] sm:$0xf] %vm392, %v663
      %671 = vrot.lane.b32.xlu0 %v597, 1
      %v672 = vpop.permute.xlu0 %671
      %673 = vrot.lane.b32.xlu0 %v598, 1
      %v674 = vpop.permute.xlu0 %673
      %v675 = vsel %vm398, %v672, %v674
      %679 = vst.msk [vmem:[#allocation2 + $0x48] sm:$0xf0] %vm403, %v672
      %680 = vst [vmem:[#allocation2 + $0x50] sm:$0xf0] %v675
      %681 = vst.msk [vmem:[#allocation2 + $0x58] sm:$0xf0] %vm406, %v674
      %682 = vst [vmem:[#allocation2 + $0x60] sm:$0xf] %v580
      %683 = vst [vmem:[#allocation2 + $0x68] sm:$0xf] %v581
      %v684 = vld [vmem:[#allocation2] sm:$0xff]
      %v685 = vld [vmem:[#allocation2 + $0x8] sm:$0xff]
      %v686 = vld [vmem:[#allocation2 + $0x10] sm:$0xff]
      %v687 = vld [vmem:[#allocation2 + $0x18] sm:$0xff]
      %v688 = vld [vmem:[#allocation2 + $0x20] sm:$0xff]
      %v689 = vld [vmem:[#allocation2 + $0x28] sm:$0xff]
      %v690 = vld [vmem:[#allocation2 + $0x30] sm:$0xff]
      %v691 = vld [vmem:[#allocation2 + $0x38] sm:$0xff]
      %v692 = vld [vmem:[#allocation2 + $0x40] sm:$0xff]
      %v693 = vld [vmem:[#allocation2 + $0x48] sm:$0xff]
      %v694 = vld [vmem:[#allocation2 + $0x50] sm:$0xff]
      %v695 = vld [vmem:[#allocation2 + $0x58] sm:$0xff]
      %v696 = vld [vmem:[#allocation2 + $0x60] sm:$0xf]
      %v697 = vld [vmem:[#allocation2 + $0x68] sm:$0xf]
      %v698 = vld [vmem:[#allocation2 + $0x70] sm:$0xf]
      %v699 = vld [vmem:[%s3] sm:$0xf]
      %v700 = vld [vmem:[%s4] sm:$0xf]
      %702 = vset.pattern.permute.xlu0 0
      %703 = vperm.xlu0 %702, %v700
      %v704 = vpop.permute.xlu0 %703
      %721 = vrot.lane.b32.xlu0 %v684, 111
      %v722 = vpop.permute.xlu0 %721
      %723 = vrot.lane.b32.xlu0 %v685, 111
      %v724 = vpop.permute.xlu0 %723
      %725 = vrot.lane.b32.xlu0 %v686, 111
      %v726 = vpop.permute.xlu0 %725
      %727 = vrot.lane.b32.xlu0 %v687, 111
      %v728 = vpop.permute.xlu0 %727
      %729 = vrot.lane.b32.xlu0 %v688, 111
      %v730 = vpop.permute.xlu0 %729
      %731 = vrot.lane.b32.xlu0 %v689, 111
      %v732 = vpop.permute.xlu0 %731
      %733 = vrot.lane.b32.xlu0 %v690, 111
      %v734 = vpop.permute.xlu0 %733
      %735 = vrot.lane.b32.xlu0 %v691, 111
      %v736 = vpop.permute.xlu0 %735
      %737 = vrot.lane.b32.xlu0 %v692, 111
      %v738 = vpop.permute.xlu0 %737
      %739 = vrot.lane.b32.xlu0 %v693, 111
      %v740 = vpop.permute.xlu0 %739
      %741 = vrot.lane.b32.xlu0 %v694, 111
      %v742 = vpop.permute.xlu0 %741
      %743 = vrot.lane.b32.xlu0 %v695, 111
      %v744 = vpop.permute.xlu0 %743
      %745 = vrot.lane.b32.xlu0 %v696, 111
      %v746 = vpop.permute.xlu0 %745
      %747 = vrot.lane.b32.xlu0 %v697, 111
      %v748 = vpop.permute.xlu0 %747
      %749 = vrot.lane.b32.xlu0 %v698, 111
      %v750 = vpop.permute.xlu0 %749
      %v751 = vsel %vm477, %v722, %v724
      %v752 = vsel %vm477, %v724, %v726
      %v753 = vsel %vm477, %v728, %v730
      %v754 = vsel %vm477, %v730, %v732
      %v755 = vsel %vm477, %v734, %v736
      %v756 = vsel %vm477, %v736, %v738
      %v757 = vsel %vm477, %v740, %v742
      %v758 = vsel %vm477, %v742, %v744
      %v759 = vsel %vm477, %v746, %v748
      %v760 = vsel %vm477, %v748, %v750
      %v770 = vsel %vm496, %v699, 0
      %v772 = vsel %vm500, %v759, 0
      %v774 = vsel %vm500, %v760, 0
      %776 = vmatprep.subr.mxu0 %v752
      %777 = vmatpush1.msra.mxu0 %v751
      %778 = vmatprep.subr.mxu0 %v754
      %779 = vmatpush1.msra.mxu0 %v753
      %780 = vmatprep.subr.mxu0 %v756
      %781 = vmatpush1.msra.mxu0 %v755
      %782 = vmatprep.subr.mxu0 %v758
      %783 = vmatpush1.msra.mxu0 %v757
      %784 = vmatprep.subr.mxu0 %v774
      %785 = vmatpush1.msra.mxu0 %v772
      %786 = vmatprep.subr.mxu0 0.0
      %787 = vmatpush1.msra.mxu0 0.0
      %788 = vmatprep.subr.mxu0 0.0
      %789 = vmatpush1.msra.mxu0 0.0
      %790 = vmatprep.subr.mxu0 0.0
      %791 = vmatpush1.msra.mxu0 0.0
      %792 = vmatprep.subr.mxu0 0.0
      %793 = vmatpush1.msra.mxu0 0.0
      %794 = vmatprep.subr.mxu0 0.0
      %795 = vmatpush1.msra.mxu0 0.0
      %796 = vmatprep.subr.mxu0 0.0
      %797 = vmatpush1.msra.mxu0 0.0
      %798 = vmatprep.subr.mxu0 0.0
      %799 = vmatpush1.msra.mxu0 0.0
      %800 = vmatprep.subr.mxu0 0.0
      %801 = vmatpush1.msra.mxu0 0.0
      %802 = vmatprep.subr.mxu0 0.0
      %803 = vmatpush1.msra.mxu0 0.0
      %804 = vmatprep.subr.mxu0 0.0
      %805 = vmatpush1.msra.mxu0 0.0
      %806 = vmatprep.subr.mxu0 0.0
      %807 = vmatpush1.msra.mxu0 0.0
      %808 = vmatprep.subr.mxu0 0.0
      %809 = vmatpush1.msra.mxu0 0.0
      %810 = vmatprep.subr.mxu0 0.0
      %811 = vmatpush1.msra.mxu0 0.0
      %812 = vmatprep.subr.mxu0 0.0
      %813 = vmatpush1.msra.mxu0 0.0
      %814 = vmatprep.subr.mxu0 0.0
      %815 = vmatpush1.msra.mxu0 0.0
      %816 = vmatprep.subr.mxu0 0.0
      %817 = vmatpush1.msra.mxu0 0.0
      %818 = vmatprep.subr.mxu0 0.0
      %819 = vmatpush1.msra.mxu0 0.0
      %820 = vmatprep.subr.mxu0 0.0
      %821 = vmatpush1.msra.mxu0 0.0
      %822 = vmatprep.subr.mxu0 0.0
      %823 = vmatpush1.msra.mxu0 0.0
      %824 = vmatprep.subr.mxu0 0.0
      %825 = vmatpush1.msra.mxu0 0.0
      %826 = vmatprep.subr.mxu0 0.0
      %827 = vmatpush1.msra.mxu0 0.0
      %828 = vmatprep.subr.mxu0 0.0
      %829 = vmatpush1.msra.mxu0 0.0
      %830 = vmatprep.subr.mxu0 0.0
      %831 = vmatpush1.msra.mxu0 0.0
      %832 = vmatprep.subr.mxu0 0.0
      %833 = vmatpush1.msra.mxu0 0.0
      %834 = vmatprep.subr.mxu0 0.0
      %835 = vmatpush1.msra.mxu0 0.0
      %836 = vmatprep.subr.mxu0 0.0
      %837 = vmatpush1.msra.mxu0 0.0
      %838 = vmatprep.subr.mxu0 0.0
      %839 = vmatpush1.msra.mxu0 0.0
      %840 = vmatprep.mubr.f32.mxu0 0.0
      %841 = vmatmul.mubr.f32.gmra.mrb[0].mxu0 %v770
      %v842 = vpop.f32.mrb[0].mxu0
      %v843 = vadd.f32 %v704, %v842
      %v844 = vpop.f32.mrb[0].mxu0
      %v845 = vadd.f32 %v704, %v844
      %846 = vdwg.mxu0
      %v847 = vadd.f32 %v843, %v273
      %v848 = vadd.f32 %v845, %v279
      %v849 = vmax.f32 %v847, 0.0
      %v850 = vmax.f32 %v848, 0.0
      %v853 = vcombine.low %v849, %v850
      %855 = vst [vmem:[%s224] sm:$0xff] %v853
      %p856 = scmp.lt.s32.totalorder %s16, 1
      %s857 = scalar_select %p856, %s16, 1
      %s858 = smul.addr %s857, 2
      %s859 = smul.addr %s858, 4
      %s860 = scalar_lea.vmem %s5, %s859
      // Predicated region
      $region41: #{basic_block_forward.1} parent=39 // pred_check
        %p861 = pneg %p144
      $region42: #{basic_block_forward.1} parent=39 // pred_check_branch
        %863 = sbr.rel (%p861) target = $region44
      $region43: #{basic_block_forward.1} parent=39 // pred_region
        _
      $region44: #{basic_block_forward.1} parent=39 // pred_fallthru
        _
    $region40: #{basic_block_forward.1} parent=5 // pred_fallthru
      _
    %p864 = scmp.le.s32.totalorder 2, %s11
    // Predicated region
    $region45: #{basic_block_forward.1} parent=5 // pred_check
      %p865 = pneg %p864
    $region46: #{basic_block_forward.1} parent=5 // pred_check_branch
      %867 = sbr.rel (%p865) target = $region48
    $region47: #{basic_block_forward.1} parent=5 // pred_region
      %s868 = ssub.s32 %s11, 2
      // Predicated region
      $region49: #{basic_block_forward.1} parent=47 // pred_check
        %p869 = pneg %p150
      $region50: #{basic_block_forward.1} parent=47 // pred_check_branch
        %871 = sbr.rel (%p869) target = $region52
      $region51: #{basic_block_forward.1} parent=47 // pred_region
        %p872 = scmp.lt.s32.totalorder %s17, 1
        %s873 = scalar_select %p872, %s17, 1
        %s874 = smul.addr %s873, 2
        %s875 = smul.addr %s874, 4
        %s876 = scalar_lea.vmem %s5, %s875
      $region52: #{basic_block_forward.1} parent=47 // pred_fallthru
        _
    $region48: #{basic_block_forward.1} parent=5 // pred_fallthru
      _
  $region6: #{basic_block_forward.1} parent=0 // loop_footer
    %s15 = sadd.s32 1, %s11
  $region7: #{basic_block_forward.1} parent=0 // loop_footer_branch
    %10 = sbr.rel target = $region3
  $region8: #{basic_block_forward.1} parent=0 // loop_exit
    _

</llo_original>
